<compile_context>
chip_gen: v7x
topology: tpu7x:2x2x1
jax: 0.10.0
libtpu: 0.0.40
codegen_flags: <defaults>
</compile_context>

<pallas_src>
import functools

import jax
import jax.numpy as jnp
from jax.experimental import pallas as pl
from jax.experimental.pallas import tpu as pltpu

H1, H2 = 256, 128        # hidden sizes fixed by the PyTorch module
LANE = 128
MAX_BATCH_TILE = 1024    # "biggest tile that fits": ~86% HBM roofline, tiny VMEM footprint


# --------------------------------------------------------------------------- #
# Kernel
# --------------------------------------------------------------------------- #
def policy_kernel(x_ref, w1_ref, b1_ref, aw2_ref, cw2_ref, b2_ref, w3_ref, b3_ref,
                  out_ref, *, action_dim):
    x = x_ref[...]   # already bf16 (cast in the wrapper)

    # Fused layer 1: one MXU pass -> (tb, 2*H1) = [actor_h1 | critic_h1].
    h1 = jnp.dot(x, w1_ref[...], preferred_element_type=jnp.float32) + b1_ref[...]
    h1 = jnp.maximum(h1, 0.0).astype(jnp.bfloat16)

    # Layer 2: two half-K dots instead of one block-diagonal dot.
    # Halves layer-2 MXU work on v5e (128-wide MXU, no zero blocks); a wash on v6e/v7x.
    h2a = jnp.dot(h1[:, :H1], aw2_ref[...], preferred_element_type=jnp.float32)
    h2c = jnp.dot(h1[:, H1:], cw2_ref[...], preferred_element_type=jnp.float32)
    h2 = jnp.concatenate([h2a, h2c], axis=-1) + b2_ref[...]
    h2 = jnp.maximum(h2, 0.0).astype(jnp.bfloat16)

    # Block-diagonal layer 3 -> lane-dense (tb, out_lanes): [logits | value | zeros].
    z = jnp.dot(h2, w3_ref[...], preferred_element_type=jnp.float32) + b3_ref[...]

    # Masked, numerically-stable softmax over the first `action_dim` lanes (f32).
    lane = jax.lax.broadcasted_iota(jnp.int32, z.shape, dimension=1)
    is_logit = lane < action_dim
    logits = jnp.where(is_logit, z, -1e30)
    m = jnp.max(logits, axis=-1, keepdims=True)
    e = jnp.exp(logits - m)                       # masked lanes -> 0
    denom = jnp.sum(e, axis=-1, keepdims=True)
    probs = e / denom                             # exact divide: rows sum to 1 exactly

    # Single lane-dense packed store: [probs | value | zeros].
    packed = jnp.where(is_logit, probs, jnp.where(lane == action_dim, z, 0.0))
    out_ref[...] = packed.astype(out_ref.dtype)


# --------------------------------------------------------------------------- #
# Param packing (PyTorch layout -> fused / block-diagonal bf16 weights)
# --------------------------------------------------------------------------- #
def pack_params(params, action_dim):
    state_dim = params["aw1"].shape[0]
    out_lanes = pl.cdiv(action_dim + 1, LANE) * LANE

    w1 = jnp.concatenate([params["aw1"], params["cw1"]], axis=1)      # (S, 2*H1)
    b1 = jnp.concatenate([params["ab1"], params["cb1"]], axis=1)      # (1, 2*H1)
    b2 = jnp.concatenate([params["ab2"], params["cb2"]], axis=1)      # (1, 2*H2)

    w3 = jnp.zeros((2 * H2, out_lanes), jnp.float32)
    w3 = w3.at[:H2, :action_dim].set(params["aw3"])
    w3 = w3.at[H2:, action_dim:action_dim + 1].set(params["cw3"])
    b3 = jnp.zeros((1, out_lanes), jnp.float32)
    b3 = b3.at[:, :action_dim].set(params["ab3"])
    b3 = b3.at[:, action_dim:action_dim + 1].set(params["cb3"])

    return dict(
        w1=w1.astype(jnp.bfloat16), b1=b1,
        aw2=params["aw2"].astype(jnp.bfloat16),
        cw2=params["cw2"].astype(jnp.bfloat16), b2=b2,
        w3=w3.astype(jnp.bfloat16), b3=b3,
        action_dim=action_dim, state_dim=state_dim, out_lanes=out_lanes,
    )


# --------------------------------------------------------------------------- #
# Generation-aware tiling
# --------------------------------------------------------------------------- #
def _num_tensorcores():
    """TensorCores per chip for megacore grid sharding (v7x=2, v5e/v6e=1)."""
    try:
        info = pltpu.get_tpu_info()
        for attr in ("num_tensorcores", "tensorcores_per_chip", "num_cores",
                     "cores_per_chip"):
            v = getattr(info, attr, None)
            if v is not None:
                return 2 if int(v) >= 2 else 1
    except Exception:
        pass
    try:
        if "7" in jax.devices()[0].device_kind.lower():
            return 2
    except Exception:
        pass
    return 1   # conservative default: single-TC behavior (v5e / v6e)


def _round_up(a, m):
    return pl.cdiv(a, m) * m


def _choose_tiling(B, num_tc):
    """Return (batch_tile, grid_steps)."""
    Bp = _round_up(max(B, 8), 8)                       # sublane multiple
    if num_tc <= 1:
        # Single TensorCore: the grid is a serial loop -> one big step wins.
        tb = min(Bp, MAX_BATCH_TILE)
        return tb, pl.cdiv(Bp, tb)
    # 2-TC (v7x): >=2 "parallel" steps, step count a multiple of num_tc so no core idles.
    steps = max(num_tc, _round_up(pl.cdiv(Bp, MAX_BATCH_TILE), num_tc))
    tb = _round_up(pl.cdiv(Bp, steps), 8)
    return tb, steps


# --------------------------------------------------------------------------- #
# Wrapper
# --------------------------------------------------------------------------- #
def policy_network_forward(x, packed, *, batch_tile=None, out_dtype=jnp.float32,
                           return_packed=False):
    """x: (B, state_dim); packed: output of pack_params. Returns (probs, value).

    out_dtype=jnp.bfloat16 halves output HBM write traffic (probs keep ~3 sig digits);
    return_packed=True returns the lane-dense [probs | value | zeros] slab and skips
    the two extra HBM passes from slicing.
    """
    B, state_dim = x.shape
    assert state_dim == packed["state_dim"]
    action_dim = packed["action_dim"]
    out_lanes = packed["out_lanes"]

    if batch_tile is None:
        tb, grid_n = _choose_tiling(B, _num_tensorcores())
    else:
        tb = batch_tile
        grid_n = pl.cdiv(B, tb)
    Bp = tb * grid_n

    # bf16 x on the wire: halves the x DMA and drops the in-kernel VPU pack pass.
    x = x.astype(jnp.bfloat16)
    if Bp != B:
        x = jnp.pad(x, ((0, Bp - B), (0, 0)))

    x_map = lambda i: (i, 0)
    w_map = lambda i: (0, 0)       # constant block index -> weights stay VMEM-resident

    def full_spec(a):
        # NOTE: pipeline_mode=pl.Buffered(1) would drop the unused second buffer for
        # these never-changing blocks; only matters if tb is pushed far past 1024 on
        # v7x's 64 MiB VMEM, so left at the default for robustness.
        return pl.BlockSpec(a.shape, w_map)

    kernel = functools.partial(policy_kernel, action_dim=action_dim)

    packed_out = pl.pallas_call(
        kernel,
        out_shape=jax.ShapeDtypeStruct((Bp, out_lanes), out_dtype),
        grid_spec=pltpu.PrefetchScalarGridSpec(
            num_scalar_prefetch=0,
            grid=(grid_n,),
            in_specs=[pl.BlockSpec((tb, state_dim), x_map),
                      full_spec(packed["w1"]), full_spec(packed["b1"]),
                      full_spec(packed["aw2"]), full_spec(packed["cw2"]),
                      full_spec(packed["b2"]),
                      full_spec(packed["w3"]), full_spec(packed["b3"])],
            out_specs=pl.BlockSpec((tb, out_lanes), x_map),
        ),
        # Working set at tb=1024 is < 10 MiB -> well under the 32 MiB scoped-VMEM
        # default on all generations; no explicit vmem_limit_bytes needed.
        compiler_params=pltpu.CompilerParams(
            dimension_semantics=("parallel",),
        ),
    )(x, packed["w1"], packed["b1"], packed["aw2"], packed["cw2"], packed["b2"],
      packed["w3"], packed["b3"])

    packed_out = packed_out[:B]
    if return_packed:
        return packed_out
    probs = packed_out[:, :action_dim]
    value = packed_out[:, action_dim:action_dim + 1]
    return probs, value


# --------------------------------------------------------------------------- #
# Synthetic init + pure-JAX reference (PyTorch semantics, f32)
# --------------------------------------------------------------------------- #
def init_params(key, state_dim, action_dim):
    """Weight layout (in, out); bias (1, out). Matches PyTorch-ish uniform init scale."""
    dims_actor = [(state_dim, H1), (H1, H2), (H2, action_dim)]
    dims_critic = [(state_dim, H1), (H1, H2), (H2, 1)]
    params = {}
    keys = jax.random.split(key, 12)
    ki = 0
    for prefix, dims in (("a", dims_actor), ("c", dims_critic)):
        for li, (fan_in, fan_out) in enumerate(dims, start=1):
            scale = 1.0 / jnp.sqrt(jnp.float32(fan_in))
            params[f"{prefix}w{li}"] = (
                jax.random.uniform(keys[ki], (fan_in, fan_out), jnp.float32,
                                   minval=-1.0, maxval=1.0) * scale)
            ki += 1
            params[f"{prefix}b{li}"] = (
                jax.random.uniform(keys[ki], (1, fan_out), jnp.float32,
                                   minval=-1.0, maxval=1.0) * scale)
            ki += 1
    return params


def reference_forward(x, p):
    h = jnp.maximum(x @ p["aw1"] + p["ab1"], 0.0)
    h = jnp.maximum(h @ p["aw2"] + p["ab2"], 0.0)
    logits = h @ p["aw3"] + p["ab3"]
    probs = jax.nn.softmax(logits, axis=-1)
    c = jnp.maximum(x @ p["cw1"] + p["cb1"], 0.0)
    c = jnp.maximum(c @ p["cw2"] + p["cb2"], 0.0)
    value = c @ p["cw3"] + p["cb3"]
    return probs, value


if __name__ == "__main__":
    B, state_dim, action_dim = 8, 32, 8

    key = jax.random.PRNGKey(0)
    kx, kp = jax.random.split(key)
    x = jax.random.normal(kx, (B, state_dim), dtype=jnp.float32)
    params = init_params(kp, state_dim, action_dim)
    packed = pack_params(params, action_dim)

    probs, value = policy_network_forward(x, packed)
    probs, value = jax.block_until_ready((probs, value))

    ref_probs, ref_value = reference_forward(x, params)
    assert probs.shape == (B, action_dim) and value.shape == (B, 1)
    # bf16 matmul inputs (f32 accumulation) -> tolerance relaxed vs the f32 reference.
    assert jnp.allclose(probs, ref_probs, atol=5e-2, rtol=5e-2)
    assert jnp.allclose(value, ref_value, atol=5e-2, rtol=5e-2)
    # exact softmax divide -> rows sum to 1 tightly
    assert jnp.allclose(jnp.sum(probs, axis=-1), 1.0, atol=1e-3)

    print("KERNEL_OK")
</pallas_src>

<mosaic_0001>
module attributes {stable_mosaic.version = 11 : i64} {
  func.func @policy_kernel(%arg0: i32, %arg1: memref<8x32xbf16, #tpu.memory_space<vmem>>, %arg2: memref<32x512xbf16, #tpu.memory_space<vmem>>, %arg3: memref<1x512xf32, #tpu.memory_space<vmem>>, %arg4: memref<256x128xbf16, #tpu.memory_space<vmem>>, %arg5: memref<256x128xbf16, #tpu.memory_space<vmem>>, %arg6: memref<1x256xf32, #tpu.memory_space<vmem>>, %arg7: memref<256x128xbf16, #tpu.memory_space<vmem>>, %arg8: memref<1x128xf32, #tpu.memory_space<vmem>>, %arg9: memref<8x128xf32, #tpu.memory_space<vmem>>) attributes {dimension_semantics = [#tpu.dimension_semantics<parallel>], iteration_bounds = array<i64: 1>, scalar_prefetch = 0 : i64, scratch_operands = 0 : i64, tpu.core_type = #tpu.core_type<tc>, window_params = [{transform_indices = @transform_0, window_bounds = array<i64: 8, 32>}, {pipeline_mode = #tpu.pipeline_mode<synchronous>, transform_indices = @transform_1, window_bounds = array<i64: 32, 512>}, {pipeline_mode = #tpu.pipeline_mode<synchronous>, transform_indices = @transform_2, window_bounds = array<i64: 1, 512>}, {pipeline_mode = #tpu.pipeline_mode<synchronous>, transform_indices = @transform_3, window_bounds = array<i64: 256, 128>}, {pipeline_mode = #tpu.pipeline_mode<synchronous>, transform_indices = @transform_4, window_bounds = array<i64: 256, 128>}, {pipeline_mode = #tpu.pipeline_mode<synchronous>, transform_indices = @transform_5, window_bounds = array<i64: 1, 256>}, {pipeline_mode = #tpu.pipeline_mode<synchronous>, transform_indices = @transform_6, window_bounds = array<i64: 256, 128>}, {pipeline_mode = #tpu.pipeline_mode<synchronous>, transform_indices = @transform_7, window_bounds = array<i64: 1, 128>}, {transform_indices = @transform_8, window_bounds = array<i64: 8, 128>}]} {
    %c0 = arith.constant 0 : index
    %c0_0 = arith.constant 0 : index
    %0 = vector.load %arg1[%c0, %c0_0] : memref<8x32xbf16, #tpu.memory_space<vmem>>, vector<8x32xbf16>
    %c0_1 = arith.constant 0 : index
    %c0_2 = arith.constant 0 : index
    %1 = vector.load %arg2[%c0_1, %c0_2] : memref<32x512xbf16, #tpu.memory_space<vmem>>, vector<32x512xbf16>
    %cst = arith.constant dense<0.000000e+00> : vector<8x512xf32>
    %2 = tpu.matmul %0, %1, %cst {dimension_numbers = #tpu.dot_dimension_numbers<[1], [0], [0], [1], [0, 0, 1, 1], [], []>} : vector<8x32xbf16>, vector<32x512xbf16>, vector<8x512xf32> -> vector<8x512xf32>
    %c0_3 = arith.constant 0 : index
    %c0_4 = arith.constant 0 : index
    %3 = vector.load %arg3[%c0_3, %c0_4] : memref<1x512xf32, #tpu.memory_space<vmem>>, vector<1x512xf32>
    %4 = vector.broadcast %3 : vector<1x512xf32> to vector<8x512xf32>
    %5 = arith.addf %2, %4 : vector<8x512xf32>
    %cst_5 = arith.constant 0.000000e+00 : f32
    %6 = vector.broadcast %cst_5 : f32 to vector<8x512xf32>
    %7 = arith.maximumf %5, %6 : vector<8x512xf32>
    %8 = arith.truncf %7 : vector<8x512xf32> to vector<8x512xbf16>
    %9 = vector.extract_strided_slice %8 {offsets = [0, 0], sizes = [8, 256], strides = [1, 1]} : vector<8x512xbf16> to vector<8x256xbf16>
    %c0_6 = arith.constant 0 : index
    %c0_7 = arith.constant 0 : index
    %10 = vector.load %arg4[%c0_6, %c0_7] : memref<256x128xbf16, #tpu.memory_space<vmem>>, vector<256x128xbf16>
    %cst_8 = arith.constant dense<0.000000e+00> : vector<8x128xf32>
    %11 = tpu.matmul %9, %10, %cst_8 {dimension_numbers = #tpu.dot_dimension_numbers<[1], [0], [0], [1], [0, 0, 1, 1], [], []>} : vector<8x256xbf16>, vector<256x128xbf16>, vector<8x128xf32> -> vector<8x128xf32>
    %12 = vector.extract_strided_slice %8 {offsets = [0, 256], sizes = [8, 256], strides = [1, 1]} : vector<8x512xbf16> to vector<8x256xbf16>
    %c0_9 = arith.constant 0 : index
    %c0_10 = arith.constant 0 : index
    %13 = vector.load %arg5[%c0_9, %c0_10] : memref<256x128xbf16, #tpu.memory_space<vmem>>, vector<256x128xbf16>
    %cst_11 = arith.constant dense<0.000000e+00> : vector<8x128xf32>
    %14 = tpu.matmul %12, %13, %cst_11 {dimension_numbers = #tpu.dot_dimension_numbers<[1], [0], [0], [1], [0, 0, 1, 1], [], []>} : vector<8x256xbf16>, vector<256x128xbf16>, vector<8x128xf32> -> vector<8x128xf32>
    %15 = tpu.concatenate %11, %14 in 1 : vector<8x128xf32>, vector<8x128xf32> -> vector<8x256xf32>
    %c0_12 = arith.constant 0 : index
    %c0_13 = arith.constant 0 : index
    %16 = vector.load %arg6[%c0_12, %c0_13] : memref<1x256xf32, #tpu.memory_space<vmem>>, vector<1x256xf32>
    %17 = vector.broadcast %16 : vector<1x256xf32> to vector<8x256xf32>
    %18 = arith.addf %15, %17 : vector<8x256xf32>
    %cst_14 = arith.constant 0.000000e+00 : f32
    %19 = vector.broadcast %cst_14 : f32 to vector<8x256xf32>
    %20 = arith.maximumf %18, %19 : vector<8x256xf32>
    %21 = arith.truncf %20 : vector<8x256xf32> to vector<8x256xbf16>
    %c0_15 = arith.constant 0 : index
    %c0_16 = arith.constant 0 : index
    %22 = vector.load %arg7[%c0_15, %c0_16] : memref<256x128xbf16, #tpu.memory_space<vmem>>, vector<256x128xbf16>
    %cst_17 = arith.constant dense<0.000000e+00> : vector<8x128xf32>
    %23 = tpu.matmul %21, %22, %cst_17 {dimension_numbers = #tpu.dot_dimension_numbers<[1], [0], [0], [1], [0, 0, 1, 1], [], []>} : vector<8x256xbf16>, vector<256x128xbf16>, vector<8x128xf32> -> vector<8x128xf32>
    %c0_18 = arith.constant 0 : index
    %c0_19 = arith.constant 0 : index
    %24 = vector.load %arg8[%c0_18, %c0_19] : memref<1x128xf32, #tpu.memory_space<vmem>>, vector<1x128xf32>
    %25 = vector.broadcast %24 : vector<1x128xf32> to vector<8x128xf32>
    %26 = arith.addf %23, %25 : vector<8x128xf32>
    %27 = tpu.iota {dimensions = array<i32: 1>} : vector<8x128xi32>
    %c8_i32 = arith.constant 8 : i32
    %28 = vector.broadcast %c8_i32 : i32 to vector<8x128xi32>
    %29 = arith.cmpi slt, %27, %28 : vector<8x128xi32>
    %cst_20 = arith.constant -1.000000e+30 : f32
    %30 = vector.broadcast %cst_20 : f32 to vector<8x128xf32>
    %31 = arith.select %29, %26, %30 : vector<8x128xi1>, vector<8x128xf32>
    %cst_21 = arith.constant dense<0xFF800000> : vector<8xf32>
    %32 = vector.multi_reduction <maximumf>, %31, %cst_21 [1] : vector<8x128xf32> to vector<8xf32>
    %33 = vector.shape_cast %32 : vector<8xf32> to vector<8x1xf32>
    %34 = vector.broadcast %33 : vector<8x1xf32> to vector<8x128xf32>
    %35 = arith.subf %31, %34 : vector<8x128xf32>
    %36 = math.exp %35 : vector<8x128xf32>
    %cst_22 = arith.constant dense<0.000000e+00> : vector<8xf32>
    %37 = vector.multi_reduction <add>, %36, %cst_22 [1] : vector<8x128xf32> to vector<8xf32>
    %38 = vector.shape_cast %37 : vector<8xf32> to vector<8x1xf32>
    %39 = vector.broadcast %38 : vector<8x1xf32> to vector<8x128xf32>
    %40 = arith.divf %36, %39 : vector<8x128xf32>
    %c8_i32_23 = arith.constant 8 : i32
    %41 = vector.broadcast %c8_i32_23 : i32 to vector<8x128xi32>
    %42 = arith.cmpi eq, %27, %41 : vector<8x128xi32>
    %cst_24 = arith.constant 0.000000e+00 : f32
    %43 = vector.broadcast %cst_24 : f32 to vector<8x128xf32>
    %44 = arith.select %42, %26, %43 : vector<8x128xi1>, vector<8x128xf32>
    %45 = arith.select %29, %40, %44 : vector<8x128xi1>, vector<8x128xf32>
    %c0_25 = arith.constant 0 : index
    %c0_26 = arith.constant 0 : index
    %46 = vector.load %arg9[%c0_25, %c0_26] : memref<8x128xf32, #tpu.memory_space<vmem>>, vector<8x128xf32>
    tpu.vector_store %arg9[%c0_25, %c0_26], %45 {strides = array<i32>} : memref<8x128xf32, #tpu.memory_space<vmem>>, vector<8x128xf32>,
    return
  }
  func.func @transform_0(%arg0: i32) -> (i32, i32) {
    %c0_i32 = arith.constant 0 : i32
    %c0_i32_0 = arith.constant 0 : i32
    return %arg0, %c0_i32 : i32, i32
  }
  func.func @transform_1(%arg0: i32) -> (i32, i32) {
    %c0_i32 = arith.constant 0 : i32
    %c0_i32_0 = arith.constant 0 : i32
    %c0_i32_1 = arith.constant 0 : i32
    return %c0_i32, %c0_i32_0 : i32, i32
  }
  func.func @transform_2(%arg0: i32) -> (i32, i32) {
    %c0_i32 = arith.constant 0 : i32
    %c0_i32_0 = arith.constant 0 : i32
    %c0_i32_1 = arith.constant 0 : i32
    return %c0_i32, %c0_i32_0 : i32, i32
  }
  func.func @transform_3(%arg0: i32) -> (i32, i32) {
    %c0_i32 = arith.constant 0 : i32
    %c0_i32_0 = arith.constant 0 : i32
    %c0_i32_1 = arith.constant 0 : i32
    return %c0_i32, %c0_i32_0 : i32, i32
  }
  func.func @transform_4(%arg0: i32) -> (i32, i32) {
    %c0_i32 = arith.constant 0 : i32
    %c0_i32_0 = arith.constant 0 : i32
    %c0_i32_1 = arith.constant 0 : i32
    return %c0_i32, %c0_i32_0 : i32, i32
  }
  func.func @transform_5(%arg0: i32) -> (i32, i32) {
    %c0_i32 = arith.constant 0 : i32
    %c0_i32_0 = arith.constant 0 : i32
    %c0_i32_1 = arith.constant 0 : i32
    return %c0_i32, %c0_i32_0 : i32, i32
  }
  func.func @transform_6(%arg0: i32) -> (i32, i32) {
    %c0_i32 = arith.constant 0 : i32
    %c0_i32_0 = arith.constant 0 : i32
    %c0_i32_1 = arith.constant 0 : i32
    return %c0_i32, %c0_i32_0 : i32, i32
  }
  func.func @transform_7(%arg0: i32) -> (i32, i32) {
    %c0_i32 = arith.constant 0 : i32
    %c0_i32_0 = arith.constant 0 : i32
    %c0_i32_1 = arith.constant 0 : i32
    return %c0_i32, %c0_i32_0 : i32, i32
  }
  func.func @transform_8(%arg0: i32) -> (i32, i32) {
    %c0_i32 = arith.constant 0 : i32
    %c0_i32_0 = arith.constant 0 : i32
    return %arg0, %c0_i32 : i32, i32
  }
}

</mosaic_0001>

<llo_original>
// kernel: tpu_custom_call.1
$region0: #{tpu_custom_call.1}
  #allocation0 [shape = 'u32[]', space=smem, size = 0x4, offset = 0x4, fixed_abs, tag = 'smem constant byte address 0x4 - core index']
  #allocation1 [shape = 'u32[144,128]{1,0:T(1,128)}', space=vmem, size = 0x12000, scoped, tag = 'internal scratch']
  %s0 = inlined_call_operand.hbm [shape: bf16[8,32], index: 0, kind: input, shape index: {}]
  %s1 = inlined_call_operand.hbm [shape: bf16[32,512], index: 1, kind: input, shape index: {}]
  %s2 = inlined_call_operand.vmem [shape: f32[1,512], index: 2, kind: input, shape index: {}]
  %s3 = inlined_call_operand.hbm [shape: bf16[256,128], index: 3, kind: input, shape index: {}]
  %s4 = inlined_call_operand.hbm [shape: bf16[256,128], index: 4, kind: input, shape index: {}]
  %s5 = inlined_call_operand.vmem [shape: f32[1,256], index: 5, kind: input, shape index: {}]
  %s6 = inlined_call_operand.hbm [shape: bf16[256,128], index: 6, kind: input, shape index: {}]
  %s7 = inlined_call_operand.vmem [shape: f32[1,128], index: 7, kind: input, shape index: {}]
  %s8 = inlined_call_operand.hbm [shape: f32[8,128], index: 8, kind: output, shape index: {}]
  %s9 = sld [smem:[#allocation0]]
  $region62: #{tpu_custom_call.1} parent=0
    _
  %s11 = ssub.s32 1, %s9
  %s12 = scalar_select 0, %s11, %s9
  $region1: #{tpu_custom_call.1} parent=0
    #allocation2 [shape = 'u8[2048]{0}', space=vmem, size = 0x800, scoped, tag = 'input window, operand 0, single buffered']
    #allocation3 [shape = 's32[1]{0}', space=sflag, size = 0x4, scoped, tag = 'scoped memory for tpu_custom_call.1']
    #allocation4 [shape = 's32[1]{0}', space=sflag, size = 0x4, scoped, tag = 'scoped memory for tpu_custom_call.1']
    #allocation5 [shape = 'u8[32768]{0}', space=vmem, size = 0x8000, scoped, tag = 'input window, operand 1, single buffered']
    #allocation6 [shape = 's32[1]{0}', space=sflag, size = 0x4, scoped, tag = 'scoped memory for tpu_custom_call.1']
    #allocation7 [shape = 'u8[65536]{0}', space=vmem, size = 0x10000, scoped, tag = 'input window, operand 3, single buffered']
    #allocation8 [shape = 'u8[65536]{0}', space=vmem, size = 0x10000, scoped, tag = 'input window, operand 4, single buffered']
    #allocation9 [shape = 's32[1]{0}', space=sflag, size = 0x4, scoped, tag = 'scoped memory for tpu_custom_call.1']
    #allocation10 [shape = 'u8[65536]{0}', space=vmem, size = 0x10000, scoped, tag = 'input window, operand 6, single buffered']
    #allocation11 [shape = 'u8[4096]{0}', space=vmem, size = 0x1000, scoped, tag = 'output window, operand 0, single buffered']
    %13 = vsyncpa [#allocation3], 0
    %14 = vsyncpa [#allocation6], 0
    %15 = vsyncpa [#allocation9], 0
    %16 = vsyncpa [#allocation4], 0
    // Predicated region
    $region2: #{tpu_custom_call.1} parent=1 // pred_check
      _
    $region3: #{tpu_custom_call.1} parent=1 // pred_check_branch
      %18 = sbr.rel (0) target = $region5
    $region4: #{tpu_custom_call.1} parent=1 // pred_region
      %s20 = ssub.s32 64, 64
      %21 = vsyncadd [#allocation3], %s20
      %s23 = sshll.u32 [#allocation2], 4
      %s24 = int_to_ptr.vmem [resolvable:$true] %s23
      %26 = dma.hbm_to_vmem [thread:$0]  %s0, 64, %s24, [#allocation3]
    $region5: #{tpu_custom_call.1} parent=1 // pred_fallthru
      _
    // Predicated region
    $region6: #{tpu_custom_call.1} parent=1 // pred_check
      _
    $region7: #{tpu_custom_call.1} parent=1 // pred_check_branch
      %28 = sbr.rel (0) target = $region9
    $region8: #{tpu_custom_call.1} parent=1 // pred_region
      %s30 = ssub.s32 1024, 1024
      %31 = vsyncadd [#allocation6], %s30
      %s32 = sshll.u32 [#allocation5], 4
      %s33 = int_to_ptr.vmem [resolvable:$true] %s32
      %38 = dma.hbm_to_vmem [thread:$0]  %s1, 1024, %s33, [#allocation6], 256, 256, 16
    $region9: #{tpu_custom_call.1} parent=1 // pred_fallthru
      _
    // Predicated region
    $region10: #{tpu_custom_call.1} parent=1 // pred_check
      _
    $region11: #{tpu_custom_call.1} parent=1 // pred_check_branch
      %40 = sbr.rel (0) target = $region13
    $region12: #{tpu_custom_call.1} parent=1 // pred_region
      _
    $region13: #{tpu_custom_call.1} parent=1 // pred_fallthru
      _
    // Predicated region
    $region14: #{tpu_custom_call.1} parent=1 // pred_check
      _
    $region15: #{tpu_custom_call.1} parent=1 // pred_check_branch
      %42 = sbr.rel (0) target = $region17
    $region16: #{tpu_custom_call.1} parent=1 // pred_region
      %s44 = ssub.s32 2048, 2048
      %45 = vsyncadd [#allocation6], %s44
      %s46 = sshll.u32 [#allocation7], 4
      %s47 = int_to_ptr.vmem [resolvable:$true] %s46
      %52 = dma.hbm_to_vmem [thread:$0]  %s3, 2048, %s47, [#allocation6], 64, 64, 4
    $region17: #{tpu_custom_call.1} parent=1 // pred_fallthru
      _
    // Predicated region
    $region18: #{tpu_custom_call.1} parent=1 // pred_check
      _
    $region19: #{tpu_custom_call.1} parent=1 // pred_check_branch
      %54 = sbr.rel (0) target = $region21
    $region20: #{tpu_custom_call.1} parent=1 // pred_region
      %s56 = ssub.s32 2048, 2048
      %57 = vsyncadd [#allocation9], %s56
      %s58 = sshll.u32 [#allocation8], 4
      %s59 = int_to_ptr.vmem [resolvable:$true] %s58
      %64 = dma.hbm_to_vmem [thread:$0]  %s4, 2048, %s59, [#allocation9], 64, 64, 4
    $region21: #{tpu_custom_call.1} parent=1 // pred_fallthru
      _
    // Predicated region
    $region22: #{tpu_custom_call.1} parent=1 // pred_check
      _
    $region23: #{tpu_custom_call.1} parent=1 // pred_check_branch
      %66 = sbr.rel (0) target = $region25
    $region24: #{tpu_custom_call.1} parent=1 // pred_region
      _
    $region25: #{tpu_custom_call.1} parent=1 // pred_fallthru
      _
    // Predicated region
    $region26: #{tpu_custom_call.1} parent=1 // pred_check
      _
    $region27: #{tpu_custom_call.1} parent=1 // pred_check_branch
      %68 = sbr.rel (0) target = $region29
    $region28: #{tpu_custom_call.1} parent=1 // pred_region
      %s70 = ssub.s32 2048, 2048
      %71 = vsyncadd [#allocation9], %s70
      %s72 = sshll.u32 [#allocation10], 4
      %s73 = int_to_ptr.vmem [resolvable:$true] %s72
      %78 = dma.hbm_to_vmem [thread:$0]  %s6, 2048, %s73, [#allocation9], 64, 64, 4
    $region29: #{tpu_custom_call.1} parent=1 // pred_fallthru
      _
    // Predicated region
    $region30: #{tpu_custom_call.1} parent=1 // pred_check
      _
    $region31: #{tpu_custom_call.1} parent=1 // pred_check_branch
      %80 = sbr.rel (0) target = $region33
    $region32: #{tpu_custom_call.1} parent=1 // pred_region
      _
    $region33: #{tpu_custom_call.1} parent=1 // pred_fallthru
      _
    // Predicated region
    $region34: #{tpu_custom_call.1} parent=1 // pred_check
      _
    $region35: #{tpu_custom_call.1} parent=1 // pred_check_branch
      %82 = sbr.rel (0) target = $region37
    $region36: #{tpu_custom_call.1} parent=1 // pred_region
      %83 = dma.done [#allocation3], 64
    $region37: #{tpu_custom_call.1} parent=1 // pred_fallthru
      _
    // Predicated region
    $region38: #{tpu_custom_call.1} parent=1 // pred_check
      _
    $region39: #{tpu_custom_call.1} parent=1 // pred_check_branch
      %85 = sbr.rel (0) target = $region41
    $region40: #{tpu_custom_call.1} parent=1 // pred_region
      %86 = dma.done [#allocation6], 1024
    $region41: #{tpu_custom_call.1} parent=1 // pred_fallthru
      _
    // Predicated region
    $region42: #{tpu_custom_call.1} parent=1 // pred_check
      _
    $region43: #{tpu_custom_call.1} parent=1 // pred_check_branch
      %88 = sbr.rel (0) target = $region45
    $region44: #{tpu_custom_call.1} parent=1 // pred_region
      %89 = dma.done [#allocation6], 2048
    $region45: #{tpu_custom_call.1} parent=1 // pred_fallthru
      _
    // Predicated region
    $region46: #{tpu_custom_call.1} parent=1 // pred_check
      _
    $region47: #{tpu_custom_call.1} parent=1 // pred_check_branch
      %91 = sbr.rel (0) target = $region49
    $region48: #{tpu_custom_call.1} parent=1 // pred_region
      %92 = dma.done [#allocation9], 2048
    $region49: #{tpu_custom_call.1} parent=1 // pred_fallthru
      _
    // Predicated region
    $region50: #{tpu_custom_call.1} parent=1 // pred_check
      _
    $region51: #{tpu_custom_call.1} parent=1 // pred_check_branch
      %94 = sbr.rel (0) target = $region53
    $region52: #{tpu_custom_call.1} parent=1 // pred_region
      %95 = dma.done [#allocation9], 2048
    $region53: #{tpu_custom_call.1} parent=1 // pred_fallthru
      _
    %v97 = vld [vmem:[#allocation2] sm:$0xf]
    %v98 = vld [vmem:[#allocation5] sm:$0xff]
    %v99 = vld [vmem:[#allocation5 + $0x8] sm:$0xff]
    %v100 = vld [vmem:[#allocation5 + $0x10] sm:$0xff]
    %v101 = vld [vmem:[#allocation5 + $0x18] sm:$0xff]
    %v102 = vld [vmem:[#allocation5 + $0x20] sm:$0xff]
    %v103 = vld [vmem:[#allocation5 + $0x28] sm:$0xff]
    %v104 = vld [vmem:[#allocation5 + $0x30] sm:$0xff]
    %v105 = vld [vmem:[#allocation5 + $0x38] sm:$0xff]
    %v106 = vld [vmem:[%s2] sm:$0xf]
    %v108 = vlaneseq
    %v109 = vshrl.u32 %v108, 7
    %v110 = vsub.s32 0, %v109
    %v111 = vrot.slane %v106, %v110
    %v112 = vlaneseq
    %v113 = vshrl.u32 %v112, 7
    %v114 = vsub.s32 1, %v113
    %v115 = vrot.slane %v106, %v114
    %v116 = vlaneseq
    %v117 = vshrl.u32 %v116, 7
    %v118 = vsub.s32 2, %v117
    %v119 = vrot.slane %v106, %v118
    %v120 = vlaneseq
    %v121 = vshrl.u32 %v120, 7
    %v122 = vsub.s32 3, %v121
    %v123 = vrot.slane %v106, %v122
    %v136 = vunpack.c.l.b16 %v98
    %v137 = vunpack.c.h.b16 %v98
    %v138 = vunpack.c.l.b16 %v99
    %v139 = vunpack.c.h.b16 %v99
    %v140 = vunpack.c.l.b16 %v100
    %v141 = vunpack.c.h.b16 %v100
    %v142 = vunpack.c.l.b16 %v101
    %v143 = vunpack.c.h.b16 %v101
    %v144 = vunpack.c.l.b16 %v102
    %v145 = vunpack.c.h.b16 %v102
    %v146 = vunpack.c.l.b16 %v103
    %v147 = vunpack.c.h.b16 %v103
    %v148 = vunpack.c.l.b16 %v104
    %v149 = vunpack.c.h.b16 %v104
    %v150 = vunpack.c.l.b16 %v105
    %v151 = vunpack.c.h.b16 %v105
    %v152 = vpack.c.b16 %v140, %v136
    %v153 = vpack.c.b16 %v141, %v137
    %v154 = vpack.c.b16 %v142, %v138
    %v155 = vpack.c.b16 %v143, %v139
    %v156 = vpack.c.b16 %v148, %v144
    %v157 = vpack.c.b16 %v149, %v145
    %v158 = vpack.c.b16 %v150, %v146
    %v159 = vpack.c.b16 %v151, %v147
    %vm168 = vcmask 261120
    %v170 = vsel %vm168, %v97, 0
    %172 = vmatprep.subr.bf16.mxu0 %v153
    %173 = vmatpush1.bf16.msra.mxu0 %v152
    %174 = vmatprep.subr.bf16.mxu0 %v157
    %175 = vmatpush1.bf16.msra.mxu0 %v156
    %176 = vmatprep.subr.bf16.mxu0 0
    %177 = vmatpush1.bf16.msra.mxu0 0
    %178 = vmatprep.subr.bf16.mxu0 0
    %179 = vmatpush1.bf16.msra.mxu0 0
    %180 = vmatprep.subr.bf16.mxu0 0
    %181 = vmatpush1.bf16.msra.mxu0 0
    %182 = vmatprep.subr.bf16.mxu0 0
    %183 = vmatpush1.bf16.msra.mxu0 0
    %184 = vmatprep.subr.bf16.mxu0 0
    %185 = vmatpush1.bf16.msra.mxu0 0
    %186 = vmatprep.subr.bf16.mxu0 0
    %187 = vmatpush1.bf16.msra.mxu0 0
    %188 = vmatprep.subr.bf16.mxu0 0
    %189 = vmatpush1.bf16.msra.mxu0 0
    %190 = vmatprep.subr.bf16.mxu0 0
    %191 = vmatpush1.bf16.msra.mxu0 0
    %192 = vmatprep.subr.bf16.mxu0 0
    %193 = vmatpush1.bf16.msra.mxu0 0
    %194 = vmatprep.subr.bf16.mxu0 0
    %195 = vmatpush1.bf16.msra.mxu0 0
    %196 = vmatprep.subr.bf16.mxu0 0
    %197 = vmatpush1.bf16.msra.mxu0 0
    %198 = vmatprep.subr.bf16.mxu0 0
    %199 = vmatpush1.bf16.msra.mxu0 0
    %200 = vmatprep.subr.bf16.mxu0 0
    %201 = vmatpush1.bf16.msra.mxu0 0
    %202 = vmatprep.subr.bf16.mxu0 0
    %203 = vmatpush1.bf16.msra.mxu0 0
    %204 = vmatprep.mubr.bf16.mxu0 0
    %205 = vmatmul.mubr.bf16.gmra.mrb[0].mxu0 %v170
    %v206 = vpop.f32.mrb[0].mxu0
    %v207 = vadd.f32 %v111, %v206
    %v208 = vpop.f32.mrb[0].mxu0
    %v209 = vadd.f32 %v115, %v208
    %v210 = vpop.f32.mrb[0].mxu0
    %v211 = vpop.f32.mrb[0].mxu0
    %212 = vdwg.mxu0
    %213 = vmatprep.subr.bf16.mxu0 %v155
    %214 = vmatpush1.bf16.msra.mxu0 %v154
    %215 = vmatprep.subr.bf16.mxu0 %v159
    %216 = vmatpush1.bf16.msra.mxu0 %v158
    %217 = vmatprep.subr.bf16.mxu0 0
    %218 = vmatpush1.bf16.msra.mxu0 0
    %219 = vmatprep.subr.bf16.mxu0 0
    %220 = vmatpush1.bf16.msra.mxu0 0
    %221 = vmatprep.subr.bf16.mxu0 0
    %222 = vmatpush1.bf16.msra.mxu0 0
    %223 = vmatprep.subr.bf16.mxu0 0
    %224 = vmatpush1.bf16.msra.mxu0 0
    %225 = vmatprep.subr.bf16.mxu0 0
    %226 = vmatpush1.bf16.msra.mxu0 0
    %227 = vmatprep.subr.bf16.mxu0 0
    %228 = vmatpush1.bf16.msra.mxu0 0
    %229 = vmatprep.subr.bf16.mxu0 0
    %230 = vmatpush1.bf16.msra.mxu0 0
    %231 = vmatprep.subr.bf16.mxu0 0
    %232 = vmatpush1.bf16.msra.mxu0 0
    %233 = vmatprep.subr.bf16.mxu0 0
    %234 = vmatpush1.bf16.msra.mxu0 0
    %235 = vmatprep.subr.bf16.mxu0 0
    %236 = vmatpush1.bf16.msra.mxu0 0
    %237 = vmatprep.subr.bf16.mxu0 0
    %238 = vmatpush1.bf16.msra.mxu0 0
    %239 = vmatprep.subr.bf16.mxu0 0
    %240 = vmatpush1.bf16.msra.mxu0 0
    %241 = vmatprep.subr.bf16.mxu0 0
    %242 = vmatpush1.bf16.msra.mxu0 0
    %243 = vmatprep.subr.bf16.mxu0 0
    %244 = vmatpush1.bf16.msra.mxu0 0
    %245 = vmatprep.mubr.bf16.mxu0 0
    %246 = vmatmul.mubr.bf16.gmra.mrb[0].mxu0 %v170
    %v247 = vpop.f32.mrb[0].mxu0
    %v248 = vadd.f32 %v119, %v247
    %v249 = vpop.f32.mrb[0].mxu0
    %v250 = vadd.f32 %v123, %v249
    %v251 = vpop.f32.mrb[0].mxu0
    %v252 = vpop.f32.mrb[0].mxu0
    %253 = vdwg.mxu0
    %v254 = vmax.f32 %v207, 0.0
    %v255 = vmax.f32 %v209, 0.0
    %v256 = vmax.f32 %v248, 0.0
    %v257 = vmax.f32 %v250, 0.0
    %v258 = vpack.c.bf16 %v254, %v254
    %v259 = vpack.c.bf16 %v255, %v255
    %v260 = vpack.c.bf16 %v256, %v256
    %v261 = vpack.c.bf16 %v257, %v257
    %v262 = vld [vmem:[#allocation7] sm:$0xf]
    %v263 = vld [vmem:[#allocation7 + $0x4] sm:$0xf]
    %v264 = vld [vmem:[#allocation7 + $0x8] sm:$0xf]
    %v265 = vld [vmem:[#allocation7 + $0xc] sm:$0xf]
    %v266 = vld [vmem:[#allocation7 + $0x10] sm:$0xf]
    %v267 = vld [vmem:[#allocation7 + $0x14] sm:$0xf]
    %v268 = vld [vmem:[#allocation7 + $0x18] sm:$0xf]
    %v269 = vld [vmem:[#allocation7 + $0x1c] sm:$0xf]
    %v270 = vld [vmem:[#allocation7 + $0x20] sm:$0xf]
    %v271 = vld [vmem:[#allocation7 + $0x24] sm:$0xf]
    %v272 = vld [vmem:[#allocation7 + $0x28] sm:$0xf]
    %v273 = vld [vmem:[#allocation7 + $0x2c] sm:$0xf]
    %v274 = vld [vmem:[#allocation7 + $0x30] sm:$0xf]
    %v275 = vld [vmem:[#allocation7 + $0x34] sm:$0xf]
    %v276 = vld [vmem:[#allocation7 + $0x38] sm:$0xf]
    %v277 = vld [vmem:[#allocation7 + $0x3c] sm:$0xf]
    %v278 = vld [vmem:[#allocation7 + $0x40] sm:$0xf]
    %v279 = vld [vmem:[#allocation7 + $0x44] sm:$0xf]
    %v280 = vld [vmem:[#allocation7 + $0x48] sm:$0xf]
    %v281 = vld [vmem:[#allocation7 + $0x4c] sm:$0xf]
    %v282 = vld [vmem:[#allocation7 + $0x50] sm:$0xf]
    %v283 = vld [vmem:[#allocation7 + $0x54] sm:$0xf]
    %v284 = vld [vmem:[#allocation7 + $0x58] sm:$0xf]
    %v285 = vld [vmem:[#allocation7 + $0x5c] sm:$0xf]
    %v286 = vld [vmem:[#allocation7 + $0x60] sm:$0xf]
    %v287 = vld [vmem:[#allocation7 + $0x64] sm:$0xf]
    %v288 = vld [vmem:[#allocation7 + $0x68] sm:$0xf]
    %v289 = vld [vmem:[#allocation7 + $0x6c] sm:$0xf]
    %v290 = vld [vmem:[#allocation7 + $0x70] sm:$0xf]
    %v291 = vld [vmem:[#allocation7 + $0x74] sm:$0xf]
    %v292 = vld [vmem:[#allocation7 + $0x78] sm:$0xf]
    %v293 = vld [vmem:[#allocation7 + $0x7c] sm:$0xf]
    %v326 = vunpack.c.l.b16 %v262
    %v327 = vunpack.c.l.b16 %v263
    %v328 = vunpack.c.l.b16 %v264
    %v329 = vunpack.c.l.b16 %v265
    %v330 = vunpack.c.l.b16 %v266
    %v331 = vunpack.c.l.b16 %v267
    %v332 = vunpack.c.l.b16 %v268
    %v333 = vunpack.c.l.b16 %v269
    %v334 = vunpack.c.l.b16 %v270
    %v335 = vunpack.c.l.b16 %v271
    %v336 = vunpack.c.l.b16 %v272
    %v337 = vunpack.c.l.b16 %v273
    %v338 = vunpack.c.l.b16 %v274
    %v339 = vunpack.c.l.b16 %v275
    %v340 = vunpack.c.l.b16 %v276
    %v341 = vunpack.c.l.b16 %v277
    %v342 = vunpack.c.l.b16 %v278
    %v343 = vunpack.c.l.b16 %v279
    %v344 = vunpack.c.l.b16 %v280
    %v345 = vunpack.c.l.b16 %v281
    %v346 = vunpack.c.l.b16 %v282
    %v347 = vunpack.c.l.b16 %v283
    %v348 = vunpack.c.l.b16 %v284
    %v349 = vunpack.c.l.b16 %v285
    %v350 = vunpack.c.l.b16 %v286
    %v351 = vunpack.c.l.b16 %v287
    %v352 = vunpack.c.l.b16 %v288
    %v353 = vunpack.c.l.b16 %v289
    %v354 = vunpack.c.l.b16 %v290
    %v355 = vunpack.c.l.b16 %v291
    %v356 = vunpack.c.l.b16 %v292
    %v357 = vunpack.c.l.b16 %v293
    %v358 = vpack.c.b16 %v327, %v326
    %v359 = vpack.c.b16 %v329, %v328
    %v360 = vpack.c.b16 %v331, %v330
    %v361 = vpack.c.b16 %v333, %v332
    %v362 = vpack.c.b16 %v335, %v334
    %v363 = vpack.c.b16 %v337, %v336
    %v364 = vpack.c.b16 %v339, %v338
    %v365 = vpack.c.b16 %v341, %v340
    %v366 = vpack.c.b16 %v343, %v342
    %v367 = vpack.c.b16 %v345, %v344
    %v368 = vpack.c.b16 %v347, %v346
    %v369 = vpack.c.b16 %v349, %v348
    %v370 = vpack.c.b16 %v351, %v350
    %v371 = vpack.c.b16 %v353, %v352
    %v372 = vpack.c.b16 %v355, %v354
    %v373 = vpack.c.b16 %v357, %v356
    %390 = vmatprep.subr.bf16.mxu0 0
    %391 = vmatpush1.bf16.msra.mxu0 %v358
    %392 = vmatprep.subr.bf16.mxu0 0
    %393 = vmatpush1.bf16.msra.mxu0 %v359
    %394 = vmatprep.subr.bf16.mxu0 0
    %395 = vmatpush1.bf16.msra.mxu0 %v360
    %396 = vmatprep.subr.bf16.mxu0 0
    %397 = vmatpush1.bf16.msra.mxu0 %v361
    %398 = vmatprep.subr.bf16.mxu0 0
    %399 = vmatpush1.bf16.msra.mxu0 %v362
    %400 = vmatprep.subr.bf16.mxu0 0
    %401 = vmatpush1.bf16.msra.mxu0 %v363
    %402 = vmatprep.subr.bf16.mxu0 0
    %403 = vmatpush1.bf16.msra.mxu0 %v364
    %404 = vmatprep.subr.bf16.mxu0 0
    %405 = vmatpush1.bf16.msra.mxu0 %v365
    %406 = vmatprep.subr.bf16.mxu0 0
    %407 = vmatpush1.bf16.msra.mxu0 %v366
    %408 = vmatprep.subr.bf16.mxu0 0
    %409 = vmatpush1.bf16.msra.mxu0 %v367
    %410 = vmatprep.subr.bf16.mxu0 0
    %411 = vmatpush1.bf16.msra.mxu0 %v368
    %412 = vmatprep.subr.bf16.mxu0 0
    %413 = vmatpush1.bf16.msra.mxu0 %v369
    %414 = vmatprep.subr.bf16.mxu0 0
    %415 = vmatpush1.bf16.msra.mxu0 %v370
    %416 = vmatprep.subr.bf16.mxu0 0
    %417 = vmatpush1.bf16.msra.mxu0 %v371
    %418 = vmatprep.subr.bf16.mxu0 0
    %419 = vmatpush1.bf16.msra.mxu0 %v372
    %420 = vmatprep.subr.bf16.mxu0 0
    %421 = vmatpush1.bf16.msra.mxu0 %v373
    %422 = vmatprep.mubr.bf16.mxu0 %v259
    %423 = vmatmul.mubr.bf16.gmra.mrb[0].mxu0 %v258
    %v424 = vpop.f32.mrb[0].mxu0
    %v425 = vadd.f32 0.0, %v424
    %v426 = vpop.f32.mrb[0].mxu0
    %v427 = vpop.f32.mrb[0].mxu0
    %v428 = vpop.f32.mrb[0].mxu0
    %429 = vdwg.mxu0
    %v430 = vld [vmem:[#allocation8] sm:$0xf]
    %v431 = vld [vmem:[#allocation8 + $0x4] sm:$0xf]
    %v432 = vld [vmem:[#allocation8 + $0x8] sm:$0xf]
    %v433 = vld [vmem:[#allocation8 + $0xc] sm:$0xf]
    %v434 = vld [vmem:[#allocation8 + $0x10] sm:$0xf]
    %v435 = vld [vmem:[#allocation8 + $0x14] sm:$0xf]
    %v436 = vld [vmem:[#allocation8 + $0x18] sm:$0xf]
    %v437 = vld [vmem:[#allocation8 + $0x1c] sm:$0xf]
    %v438 = vld [vmem:[#allocation8 + $0x20] sm:$0xf]
    %v439 = vld [vmem:[#allocation8 + $0x24] sm:$0xf]
    %v440 = vld [vmem:[#allocation8 + $0x28] sm:$0xf]
    %v441 = vld [vmem:[#allocation8 + $0x2c] sm:$0xf]
    %v442 = vld [vmem:[#allocation8 + $0x30] sm:$0xf]
    %v443 = vld [vmem:[#allocation8 + $0x34] sm:$0xf]
    %v444 = vld [vmem:[#allocation8 + $0x38] sm:$0xf]
    %v445 = vld [vmem:[#allocation8 + $0x3c] sm:$0xf]
    %v446 = vld [vmem:[#allocation8 + $0x40] sm:$0xf]
    %v447 = vld [vmem:[#allocation8 + $0x44] sm:$0xf]
    %v448 = vld [vmem:[#allocation8 + $0x48] sm:$0xf]
    %v449 = vld [vmem:[#allocation8 + $0x4c] sm:$0xf]
    %v450 = vld [vmem:[#allocation8 + $0x50] sm:$0xf]
    %v451 = vld [vmem:[#allocation8 + $0x54] sm:$0xf]
    %v452 = vld [vmem:[#allocation8 + $0x58] sm:$0xf]
    %v453 = vld [vmem:[#allocation8 + $0x5c] sm:$0xf]
    %v454 = vld [vmem:[#allocation8 + $0x60] sm:$0xf]
    %v455 = vld [vmem:[#allocation8 + $0x64] sm:$0xf]
    %v456 = vld [vmem:[#allocation8 + $0x68] sm:$0xf]
    %v457 = vld [vmem:[#allocation8 + $0x6c] sm:$0xf]
    %v458 = vld [vmem:[#allocation8 + $0x70] sm:$0xf]
    %v459 = vld [vmem:[#allocation8 + $0x74] sm:$0xf]
    %v460 = vld [vmem:[#allocation8 + $0x78] sm:$0xf]
    %v461 = vld [vmem:[#allocation8 + $0x7c] sm:$0xf]
    %v494 = vunpack.c.l.b16 %v430
    %v495 = vunpack.c.l.b16 %v431
    %v496 = vunpack.c.l.b16 %v432
    %v497 = vunpack.c.l.b16 %v433
    %v498 = vunpack.c.l.b16 %v434
    %v499 = vunpack.c.l.b16 %v435
    %v500 = vunpack.c.l.b16 %v436
    %v501 = vunpack.c.l.b16 %v437
    %v502 = vunpack.c.l.b16 %v438
    %v503 = vunpack.c.l.b16 %v439
    %v504 = vunpack.c.l.b16 %v440
    %v505 = vunpack.c.l.b16 %v441
    %v506 = vunpack.c.l.b16 %v442
    %v507 = vunpack.c.l.b16 %v443
    %v508 = vunpack.c.l.b16 %v444
    %v509 = vunpack.c.l.b16 %v445
    %v510 = vunpack.c.l.b16 %v446
    %v511 = vunpack.c.l.b16 %v447
    %v512 = vunpack.c.l.b16 %v448
    %v513 = vunpack.c.l.b16 %v449
    %v514 = vunpack.c.l.b16 %v450
    %v515 = vunpack.c.l.b16 %v451
    %v516 = vunpack.c.l.b16 %v452
    %v517 = vunpack.c.l.b16 %v453
    %v518 = vunpack.c.l.b16 %v454
    %v519 = vunpack.c.l.b16 %v455
    %v520 = vunpack.c.l.b16 %v456
    %v521 = vunpack.c.l.b16 %v457
    %v522 = vunpack.c.l.b16 %v458
    %v523 = vunpack.c.l.b16 %v459
    %v524 = vunpack.c.l.b16 %v460
    %v525 = vunpack.c.l.b16 %v461
    %v526 = vpack.c.b16 %v495, %v494
    %v527 = vpack.c.b16 %v497, %v496
    %v528 = vpack.c.b16 %v499, %v498
    %v529 = vpack.c.b16 %v501, %v500
    %v530 = vpack.c.b16 %v503, %v502
    %v531 = vpack.c.b16 %v505, %v504
    %v532 = vpack.c.b16 %v507, %v506
    %v533 = vpack.c.b16 %v509, %v508
    %v534 = vpack.c.b16 %v511, %v510
    %v535 = vpack.c.b16 %v513, %v512
    %v536 = vpack.c.b16 %v515, %v514
    %v537 = vpack.c.b16 %v517, %v516
    %v538 = vpack.c.b16 %v519, %v518
    %v539 = vpack.c.b16 %v521, %v520
    %v540 = vpack.c.b16 %v523, %v522
    %v541 = vpack.c.b16 %v525, %v524
    %558 = vmatprep.subr.bf16.mxu0 0
    %559 = vmatpush1.bf16.msra.mxu0 %v526
    %560 = vmatprep.subr.bf16.mxu0 0
    %561 = vmatpush1.bf16.msra.mxu0 %v527
    %562 = vmatprep.subr.bf16.mxu0 0
    %563 = vmatpush1.bf16.msra.mxu0 %v528
    %564 = vmatprep.subr.bf16.mxu0 0
    %565 = vmatpush1.bf16.msra.mxu0 %v529
    %566 = vmatprep.subr.bf16.mxu0 0
    %567 = vmatpush1.bf16.msra.mxu0 %v530
    %568 = vmatprep.subr.bf16.mxu0 0
    %569 = vmatpush1.bf16.msra.mxu0 %v531
    %570 = vmatprep.subr.bf16.mxu0 0
    %571 = vmatpush1.bf16.msra.mxu0 %v532
    %572 = vmatprep.subr.bf16.mxu0 0
    %573 = vmatpush1.bf16.msra.mxu0 %v533
    %574 = vmatprep.subr.bf16.mxu0 0
    %575 = vmatpush1.bf16.msra.mxu0 %v534
    %576 = vmatprep.subr.bf16.mxu0 0
    %577 = vmatpush1.bf16.msra.mxu0 %v535
    %578 = vmatprep.subr.bf16.mxu0 0
    %579 = vmatpush1.bf16.msra.mxu0 %v536
    %580 = vmatprep.subr.bf16.mxu0 0
    %581 = vmatpush1.bf16.msra.mxu0 %v537
    %582 = vmatprep.subr.bf16.mxu0 0
    %583 = vmatpush1.bf16.msra.mxu0 %v538
    %584 = vmatprep.subr.bf16.mxu0 0
    %585 = vmatpush1.bf16.msra.mxu0 %v539
    %586 = vmatprep.subr.bf16.mxu0 0
    %587 = vmatpush1.bf16.msra.mxu0 %v540
    %588 = vmatprep.subr.bf16.mxu0 0
    %589 = vmatpush1.bf16.msra.mxu0 %v541
    %590 = vmatprep.mubr.bf16.mxu0 %v261
    %591 = vmatmul.mubr.bf16.gmra.mrb[0].mxu0 %v260
    %v592 = vpop.f32.mrb[0].mxu0
    %v593 = vadd.f32 0.0, %v592
    %v594 = vpop.f32.mrb[0].mxu0
    %v595 = vpop.f32.mrb[0].mxu0
    %v596 = vpop.f32.mrb[0].mxu0
    %597 = vdwg.mxu0
    %v598 = vld [vmem:[%s5] sm:$0x3]
    %v600 = vlaneseq
    %v601 = vshrl.u32 %v600, 7
    %v602 = vsub.s32 0, %v601
    %v603 = vrot.slane %v598, %v602
    %v604 = vlaneseq
    %v605 = vshrl.u32 %v604, 7
    %v606 = vsub.s32 1, %v605
    %v607 = vrot.slane %v598, %v606
    %v610 = vadd.f32 %v425, %v603
    %v611 = vadd.f32 %v593, %v607
    %v612 = vmax.f32 %v610, 0.0
    %v613 = vmax.f32 %v611, 0.0
    %v614 = vpack.c.bf16 %v612, %v612
    %v615 = vpack.c.bf16 %v613, %v613
    %v616 = vld [vmem:[#allocation10] sm:$0xf]
    %v617 = vld [vmem:[#allocation10 + $0x4] sm:$0xf]
    %v618 = vld [vmem:[#allocation10 + $0x8] sm:$0xf]
    %v619 = vld [vmem:[#allocation10 + $0xc] sm:$0xf]
    %v620 = vld [vmem:[#allocation10 + $0x10] sm:$0xf]
    %v621 = vld [vmem:[#allocation10 + $0x14] sm:$0xf]
    %v622 = vld [vmem:[#allocation10 + $0x18] sm:$0xf]
    %v623 = vld [vmem:[#allocation10 + $0x1c] sm:$0xf]
    %v624 = vld [vmem:[#allocation10 + $0x20] sm:$0xf]
    %v625 = vld [vmem:[#allocation10 + $0x24] sm:$0xf]
    %v626 = vld [vmem:[#allocation10 + $0x28] sm:$0xf]
    %v627 = vld [vmem:[#allocation10 + $0x2c] sm:$0xf]
    %v628 = vld [vmem:[#allocation10 + $0x30] sm:$0xf]
    %v629 = vld [vmem:[#allocation10 + $0x34] sm:$0xf]
    %v630 = vld [vmem:[#allocation10 + $0x38] sm:$0xf]
    %v631 = vld [vmem:[#allocation10 + $0x3c] sm:$0xf]
    %v632 = vld [vmem:[#allocation10 + $0x40] sm:$0xf]
    %v633 = vld [vmem:[#allocation10 + $0x44] sm:$0xf]
    %v634 = vld [vmem:[#allocation10 + $0x48] sm:$0xf]
    %v635 = vld [vmem:[#allocation10 + $0x4c] sm:$0xf]
    %v636 = vld [vmem:[#allocation10 + $0x50] sm:$0xf]
    %v637 = vld [vmem:[#allocation10 + $0x54] sm:$0xf]
    %v638 = vld [vmem:[#allocation10 + $0x58] sm:$0xf]
    %v639 = vld [vmem:[#allocation10 + $0x5c] sm:$0xf]
    %v640 = vld [vmem:[#allocation10 + $0x60] sm:$0xf]
    %v641 = vld [vmem:[#allocation10 + $0x64] sm:$0xf]
    %v642 = vld [vmem:[#allocation10 + $0x68] sm:$0xf]
    %v643 = vld [vmem:[#allocation10 + $0x6c] sm:$0xf]
    %v644 = vld [vmem:[#allocation10 + $0x70] sm:$0xf]
    %v645 = vld [vmem:[#allocation10 + $0x74] sm:$0xf]
    %v646 = vld [vmem:[#allocation10 + $0x78] sm:$0xf]
    %v647 = vld [vmem:[#allocation10 + $0x7c] sm:$0xf]
    %v648 = vld [vmem:[%s7] sm:$0x1]
    %v650 = vlaneseq
    %v651 = vshrl.u32 %v650, 7
    %v652 = vsub.s32 0, %v651
    %v653 = vrot.slane %v648, %v652
    %v687 = vunpack.c.l.b16 %v616
    %v688 = vunpack.c.l.b16 %v617
    %v689 = vunpack.c.l.b16 %v618
    %v690 = vunpack.c.l.b16 %v619
    %v691 = vunpack.c.l.b16 %v620
    %v692 = vunpack.c.l.b16 %v621
    %v693 = vunpack.c.l.b16 %v622
    %v694 = vunpack.c.l.b16 %v623
    %v695 = vunpack.c.l.b16 %v624
    %v696 = vunpack.c.l.b16 %v625
    %v697 = vunpack.c.l.b16 %v626
    %v698 = vunpack.c.l.b16 %v627
    %v699 = vunpack.c.l.b16 %v628
    %v700 = vunpack.c.l.b16 %v629
    %v701 = vunpack.c.l.b16 %v630
    %v702 = vunpack.c.l.b16 %v631
    %v703 = vunpack.c.l.b16 %v632
    %v704 = vunpack.c.l.b16 %v633
    %v705 = vunpack.c.l.b16 %v634
    %v706 = vunpack.c.l.b16 %v635
    %v707 = vunpack.c.l.b16 %v636
    %v708 = vunpack.c.l.b16 %v637
    %v709 = vunpack.c.l.b16 %v638
    %v710 = vunpack.c.l.b16 %v639
    %v711 = vunpack.c.l.b16 %v640
    %v712 = vunpack.c.l.b16 %v641
    %v713 = vunpack.c.l.b16 %v642
    %v714 = vunpack.c.l.b16 %v643
    %v715 = vunpack.c.l.b16 %v644
    %v716 = vunpack.c.l.b16 %v645
    %v717 = vunpack.c.l.b16 %v646
    %v718 = vunpack.c.l.b16 %v647
    %v719 = vpack.c.b16 %v688, %v687
    %v720 = vpack.c.b16 %v690, %v689
    %v721 = vpack.c.b16 %v692, %v691
    %v722 = vpack.c.b16 %v694, %v693
    %v723 = vpack.c.b16 %v696, %v695
    %v724 = vpack.c.b16 %v698, %v697
    %v725 = vpack.c.b16 %v700, %v699
    %v726 = vpack.c.b16 %v702, %v701
    %v727 = vpack.c.b16 %v704, %v703
    %v728 = vpack.c.b16 %v706, %v705
    %v729 = vpack.c.b16 %v708, %v707
    %v730 = vpack.c.b16 %v710, %v709
    %v731 = vpack.c.b16 %v712, %v711
    %v732 = vpack.c.b16 %v714, %v713
    %v733 = vpack.c.b16 %v716, %v715
    %v734 = vpack.c.b16 %v718, %v717
    %751 = vmatprep.subr.bf16.mxu0 0
    %752 = vmatpush1.bf16.msra.mxu0 %v719
    %753 = vmatprep.subr.bf16.mxu0 0
    %754 = vmatpush1.bf16.msra.mxu0 %v720
    %755 = vmatprep.subr.bf16.mxu0 0
    %756 = vmatpush1.bf16.msra.mxu0 %v721
    %757 = vmatprep.subr.bf16.mxu0 0
    %758 = vmatpush1.bf16.msra.mxu0 %v722
    %759 = vmatprep.subr.bf16.mxu0 0
    %760 = vmatpush1.bf16.msra.mxu0 %v723
    %761 = vmatprep.subr.bf16.mxu0 0
    %762 = vmatpush1.bf16.msra.mxu0 %v724
    %763 = vmatprep.subr.bf16.mxu0 0
    %764 = vmatpush1.bf16.msra.mxu0 %v725
    %765 = vmatprep.subr.bf16.mxu0 0
    %766 = vmatpush1.bf16.msra.mxu0 %v726
    %767 = vmatprep.subr.bf16.mxu0 0
    %768 = vmatpush1.bf16.msra.mxu0 %v727
    %769 = vmatprep.subr.bf16.mxu0 0
    %770 = vmatpush1.bf16.msra.mxu0 %v728
    %771 = vmatprep.subr.bf16.mxu0 0
    %772 = vmatpush1.bf16.msra.mxu0 %v729
    %773 = vmatprep.subr.bf16.mxu0 0
    %774 = vmatpush1.bf16.msra.mxu0 %v730
    %775 = vmatprep.subr.bf16.mxu0 0
    %776 = vmatpush1.bf16.msra.mxu0 %v731
    %777 = vmatprep.subr.bf16.mxu0 0
    %778 = vmatpush1.bf16.msra.mxu0 %v732
    %779 = vmatprep.subr.bf16.mxu0 0
    %780 = vmatpush1.bf16.msra.mxu0 %v733
    %781 = vmatprep.subr.bf16.mxu0 0
    %782 = vmatpush1.bf16.msra.mxu0 %v734
    %783 = vmatprep.mubr.bf16.mxu0 %v615
    %784 = vmatmul.mubr.bf16.gmra.mrb[0].mxu0 %v614
    %v785 = vpop.f32.mrb[0].mxu0
    %v786 = vadd.f32 %v653, %v785
    %v787 = vpop.f32.mrb[0].mxu0
    %v788 = vpop.f32.mrb[0].mxu0
    %v789 = vpop.f32.mrb[0].mxu0
    %790 = vdwg.mxu0
    %v791 = vlaneseq
    %v792 = vand.u32 %v791, 127
    %vm793 = vcmp.lt.s32.totalorder %v792, 8
    %v794 = vsel %vm793, %v786, -1e+30
    %795 = vmax.xlane.f32.xlu0 %v794
    %v796 = vpop.xlane.xlu0 %795
    %v797 = vsub.f32 %v794, %v796
    %v798 = vmul.f32 %v797, 1.442695
    %v799 = vpow.pop %v798
    %800 = vadd.xlane.f32.xlu0 %v799
    %v801 = vpop.xlane.xlu0 %800
    %v802 = vrcp.pop %v801
    %v803 = vmul.f32 %v799, %v802
    %vm804 = vcmp.eq.s32.totalorder %v792, 8
    %v805 = vsel %vm804, %v786, 0.0
    %v806 = vsel %vm793, %v803, %v805
    %807 = vst [vmem:[#allocation11] sm:$0xff] %v806
    // Predicated region
    $region54: #{tpu_custom_call.1} parent=1 // pred_check
      _
    $region55: #{tpu_custom_call.1} parent=1 // pred_check_branch
      %809 = sbr.rel (0) target = $region57
    $region56: #{tpu_custom_call.1} parent=1 // pred_region
      %s811 = ssub.s32 128, 128
      %812 = vsyncadd [#allocation4], %s811
      %s814 = sshll.u32 [#allocation11], 4
      %s815 = int_to_ptr.vmem [resolvable:$true] %s814
      %817 = dma.vmem_to_hbm [thread:$0]  %s815, 128, %s8, [#allocation4]
    $region57: #{tpu_custom_call.1} parent=1 // pred_fallthru
      _
    // Predicated region
    $region58: #{tpu_custom_call.1} parent=1 // pred_check
      _
    $region59: #{tpu_custom_call.1} parent=1 // pred_check_branch
      %819 = sbr.rel (0) target = $region61
    $region60: #{tpu_custom_call.1} parent=1 // pred_region
      %820 = dma.done [#allocation4], 128
    $region61: #{tpu_custom_call.1} parent=1 // pred_fallthru
      _
    %821 = vsyncpa [#allocation3], 1
    %822 = vsyncpa [#allocation6], 1
    %823 = vsyncpa [#allocation9], 1
    %824 = vsyncpa [#allocation4], 1

</llo_original>
